<compile_context>
chip_gen: v7x
topology: tpu7x:2x2x1
jax: 0.10.0
libtpu: 0.0.40
codegen_flags: <defaults>
</compile_context>

<pallas_src>
import jax
import jax.numpy as jnp
from jax.experimental import pallas as pl
from jax.experimental.pallas import tpu as pltpu


def _round_up(x, m):
    return ((x + m - 1) // m) * m


def _ceil_div(a, b):
    return -(-a // b)


# ----------------------------------------------------------------------------- kernels

def fused_gcn_kernel(a_ref, dr_ref, dc_ref, xw_ref, b_ref, o_ref, acc_ref):
    """One tile of relu(D^-1/2 A D^-1/2 @ (X W) + b), K (columns of A) as reduction.

    a_ref  : (tm, tk) bf16  unnormalized adjacency block (with self loops)
    dr_ref : (tm, 1)  f32   d_inv_sqrt for the rows of this tile
    dc_ref : (1,  tk) f32   d_inv_sqrt for the columns of this tile
    xw_ref : (tk, Hp) bf16  precomputed X @ [Wc | Wh] block
    b_ref  : (1,  Hp) f32   fused bias
    o_ref  : (tm, Hp) bf16  output slab (resident across the K axis)
    acc_ref: (tm, Hp) f32   accumulator
    """
    k = pl.program_id(1)

    @pl.when(k == 0)
    def _init():
        acc_ref[...] = jnp.zeros_like(acc_ref)

    # normalize the adjacency tile in f32 (more accurate than pre-scaling then bf16)
    a = a_ref[...].astype(jnp.float32) * dr_ref[...] * dc_ref[...]
    acc_ref[...] += jnp.dot(a.astype(jnp.bfloat16), xw_ref[...],
                            preferred_element_type=jnp.float32)

    @pl.when(k == pl.num_programs(1) - 1)
    def _finalize():
        o_ref[...] = jnp.maximum(acc_ref[...] + b_ref[...], 0.0).astype(o_ref.dtype)


def segment_mean_kernel(inv_ref, feat_ref, o_ref, acc_ref):
    """Fused Delete_duplicate_ID hot path (scatter_add + bincount + divide).

    inv_ref  : (1,  te) int32   inverse indices chunk (padded entries = -1)
    feat_ref : (te, Dp) bf16    [ones | features] chunk (padded rows = 0)
    o_ref    : (tn, Dp) f32     group means (column 0 holds counts/counts == 1)
    acc_ref  : (tn, Dp) f32     running sums (column 0 = counts)
    """
    i = pl.program_id(0)
    e = pl.program_id(1)

    @pl.when(e == 0)
    def _init():
        acc_ref[...] = jnp.zeros_like(acc_ref)

    tn = acc_ref.shape[0]
    # (tn,1) row-id column broadcast against the (1,te) inverse row -> (tn,te) one-hot
    row_ids = jax.lax.broadcasted_iota(jnp.int32, (tn, 1), 0) + i * tn
    mask = (row_ids == inv_ref[...]).astype(jnp.bfloat16)
    # sums AND counts from a single MXU pass (ones column is column 0 of feat)
    acc_ref[...] += jnp.dot(mask, feat_ref[...],
                            preferred_element_type=jnp.float32)

    @pl.when(e == pl.num_programs(1) - 1)
    def _finalize():
        acc = acc_ref[...]
        counts = acc[:, 0:1]
        safe = jnp.maximum(counts, 1.0)
        o_ref[...] = jnp.where(counts > 0.0, acc / safe, 0.0)


# ----------------------------------------------------------------------------- wrappers

def gcn_encode(edge_index, X, W, b, *, tile_m=512, tile_k=512):
    """relu(A_hat @ X @ W + b) with fused (2H-wide) weights.

    A_hat is the symmetric-normalized adjacency with self loops; it is built ONCE
    directly in bf16 and normalized inside the kernel via d_inv_sqrt row/col vectors.
    """
    N, F = X.shape
    Ho = W.shape[1]

    tm = min(tile_m, _round_up(N, 16))          # bf16 sublane packing
    # keep >= 2 row tiles when possible (feeds both TensorCores on megacore parts)
    if _round_up(N, tm) // tm < 2 and N > 16:
        tm = max(16, _round_up(_ceil_div(N, 2), 16))
    tk = min(tile_k, _round_up(N, 128))
    Nm = _round_up(N, tm)
    Nk = _round_up(N, tk)
    Hp = _round_up(Ho, 128)

    # --- adjacency (unnormalized, with self loops), built directly in bf16, padded
    src, dst = edge_index[0], edge_index[1]
    A_p = jnp.zeros((Nm, Nk), jnp.bfloat16)
    A_p = A_p.at[src, dst].set(jnp.bfloat16(1.0))
    A_p = A_p.at[dst, src].set(jnp.bfloat16(1.0))
    diag = jnp.arange(N)
    A_p = A_p.at[diag, diag].add(jnp.bfloat16(1.0))

    # --- GCN degree normalization vectors (padded rows/cols get 0)
    deg = jnp.sum(A_p.astype(jnp.float32), axis=1, keepdims=True)        # (Nm, 1)
    dis = jnp.where(deg > 0.0, jax.lax.rsqrt(jnp.maximum(deg, 1e-12)), 0.0)
    d_row = dis                                                          # (Nm, 1)
    d_col = jnp.zeros((1, Nk), jnp.float32).at[0, :N].set(dis[:N, 0])    # (1, Nk)

    # --- small XW = X @ [Wc | Wh] precompute (cheaper association: Hp <= Fp streaming)
    XW = jnp.dot(X.astype(jnp.bfloat16), W.astype(jnp.bfloat16),
                 preferred_element_type=jnp.float32)                     # (N, Ho)
    XW_p = jnp.zeros((Nk, Hp), jnp.bfloat16).at[:N, :Ho].set(XW.astype(jnp.bfloat16))
    b_p = jnp.zeros((1, Hp), jnp.float32).at[0, :Ho].set(b.astype(jnp.float32))

    grid = (Nm // tm, Nk // tk)
    flops = 2 * Nm * Nk * Hp + 2 * Nm * Nk
    bytes_accessed = Nm * Nk * 2 + Nk * Hp * 2 + Nm * Hp * 2 + (Nm + Nk + Hp) * 4

    out = pl.pallas_call(
        fused_gcn_kernel,
        out_shape=jax.ShapeDtypeStruct((Nm, Hp), jnp.bfloat16),
        grid_spec=pltpu.PrefetchScalarGridSpec(
            num_scalar_prefetch=0,
            grid=grid,
            in_specs=[
                pl.BlockSpec((tm, tk), lambda i, k: (i, k)),   # A
                pl.BlockSpec((tm, 1), lambda i, k: (i, 0)),    # d_row
                pl.BlockSpec((1, tk), lambda i, k: (0, k)),    # d_col
                pl.BlockSpec((tk, Hp), lambda i, k: (k, 0)),   # XW
                pl.BlockSpec((1, Hp), lambda i, k: (0, 0)),    # bias
            ],
            out_specs=pl.BlockSpec((tm, Hp), lambda i, k: (i, 0)),
            scratch_shapes=[pltpu.VMEM((tm, Hp), jnp.float32)],
        ),
        compiler_params=pltpu.CompilerParams(
            dimension_semantics=("parallel", "arbitrary"),
            vmem_limit_bytes=48 * 1024 * 1024,
        ),
        cost_estimate=pl.CostEstimate(
            flops=flops, transcendentals=0, bytes_accessed=bytes_accessed),
    )(A_p, d_row, d_col, XW_p, b_p)
    return out[:N, :Ho]


def segment_mean(inverse_indices, feats, n_out, *, tile_n=256, tile_e=1024):
    """Group-mean of the concatenated `feats` rows by inverse_indices.

    feats: list of (E, D_i) arrays (placed side by side in one padded bf16 buffer so
    all three Delete_duplicate_ID calls share one one-hot mask / one MXU pass).
    Returns one (n_out, D_i) f32 array per input feature (unused group rows = 0).
    """
    E = feats[0].shape[0]
    dims = [f.shape[1] for f in feats]
    Da = 1 + sum(dims)                     # + counts column

    tn = min(tile_n, _round_up(n_out, 16))
    if _round_up(n_out, tn) // tn < 2 and n_out > 16:
        tn = max(16, _round_up(_ceil_div(n_out, 2), 16))
    te = min(tile_e, _round_up(E, 128))
    Np = _round_up(n_out, tn)
    Ep = _round_up(E, te)
    Dp = _round_up(Da, 128)

    inv_p = jnp.full((1, Ep), -1, jnp.int32).at[0, :E].set(
        inverse_indices.astype(jnp.int32).reshape(-1))

    # build padded buffer directly in bf16; column 0 is the ones/counts column
    feat_p = jnp.zeros((Ep, Dp), jnp.bfloat16)
    feat_p = feat_p.at[:E, 0].set(jnp.bfloat16(1.0))
    off = 1
    for f in feats:
        D = f.shape[1]
        feat_p = feat_p.at[:E, off:off + D].set(f.astype(jnp.bfloat16))
        off += D

    grid = (Np // tn, Ep // te)

    # TODO(synk): for very large E, add scalar-prefetched per-chunk [min,max] group
    # ranges over sorted inverse indices and pl.when-skip non-intersecting chunks to
    # escape the O(N*E) dense one-hot formulation.
    out = pl.pallas_call(
        segment_mean_kernel,
        out_shape=jax.ShapeDtypeStruct((Np, Dp), jnp.float32),
        grid_spec=pltpu.PrefetchScalarGridSpec(
            num_scalar_prefetch=0,
            grid=grid,
            in_specs=[
                pl.BlockSpec((1, te), lambda i, e: (0, e)),
                pl.BlockSpec((te, Dp), lambda i, e: (e, 0)),
            ],
            out_specs=pl.BlockSpec((tn, Dp), lambda i, e: (i, 0)),
            scratch_shapes=[pltpu.VMEM((tn, Dp), jnp.float32)],
        ),
        compiler_params=pltpu.CompilerParams(
            dimension_semantics=("parallel", "arbitrary"),
            vmem_limit_bytes=48 * 1024 * 1024,
        ),
        cost_estimate=pl.CostEstimate(
            flops=2 * Np * Ep * Dp, transcendentals=0,
            bytes_accessed=Ep * Dp * 2 + Np * Dp * 4 + Ep * 4),
    )(inv_p, feat_p)

    results = []
    off = 1
    for D in dims:
        results.append(out[:n_out, off:off + D])
        off += D
    return results


# ----------------------------------------------------------------------------- glue

def congib_forward(data_x, data_edge_index,
                   conj_edge_x, conj_edge_index, conj_edge_is_dummy,
                   params, training=True):
    N, F = data_x.shape
    H = params["Wc1"].shape[1]

    # fuse the common/specific encoders that share (A, X): one A-stream per graph
    W1 = jnp.concatenate([params["Wc1"], params["Wh1"]], axis=1)      # (F, 2H)
    b1 = jnp.concatenate([params["bc1"], params["bh1"]])
    z1 = gcn_encode(data_edge_index, data_x, W1, b1)                  # [N, 2H] = [c1 | h1]

    if not training:
        # eval path: cat([c1, h1], dim=-1) is exactly the fused slab; no conj-graph work
        return z1

    c1, h1 = z1[:, :H], z1[:, H:]

    E = conj_edge_x.shape[0]
    W2 = jnp.concatenate([params["Wc2"], params["Wh2"]], axis=1)
    b2 = jnp.concatenate([params["bc2"], params["bh2"]])
    z2 = gcn_encode(conj_edge_index, conj_edge_x, W2, b2)             # [E, 2H] = [c2 | h2]

    # fuse the three Delete_duplicate_ID calls: one one-hot mask, one MXU pass
    # torch.unique(return_inverse=True) equivalent; size= keeps it jit-safe
    _, inverse_indices = jnp.unique(conj_edge_is_dummy, size=E, return_inverse=True)
    z2_mean, edge_feature = segment_mean(inverse_indices, [z2, conj_edge_x], N)

    c2 = z2_mean[:, :H]
    h2 = z2_mean[:, H:2 * H]
    return c1, c2, h1, h2, edge_feature


# ----------------------------------------------------------------------------- main

if __name__ == "__main__":
    key = jax.random.PRNGKey(0)

    # small synthetic shapes
    N = 16          # nodes in the original graph
    F = 8           # num_features
    H = 16          # hidden
    E = 24          # conjugate-graph nodes (= edges of the original graph)
    n_edges1 = 32   # edges in original graph
    n_edges2 = 40   # edges in conjugate graph

    ks = jax.random.split(key, 12)
    data_x = jax.random.normal(ks[0], (N, F), jnp.float32)
    conj_edge_x = jax.random.normal(ks[1], (E, F), jnp.float32)
    data_edge_index = jax.random.randint(ks[2], (2, n_edges1), 0, N, jnp.int32)
    conj_edge_index = jax.random.randint(ks[3], (2, n_edges2), 0, E, jnp.int32)
    conj_edge_is_dummy = jax.random.randint(ks[4], (E,), 0, 12, jnp.int32)

    def glorot(k, shape):
        lim = jnp.sqrt(6.0 / (shape[0] + shape[1]))
        return jax.random.uniform(k, shape, jnp.float32, -lim, lim)

    params = {
        "Wc1": glorot(ks[5], (F, H)), "bc1": jnp.zeros((H,), jnp.float32),
        "Wh1": glorot(ks[6], (F, H)), "bh1": jnp.zeros((H,), jnp.float32),
        "Wc2": glorot(ks[7], (F, H)), "bc2": jnp.zeros((H,), jnp.float32),
        "Wh2": glorot(ks[8], (F, H)), "bh2": jnp.zeros((H,), jnp.float32),
    }

    # training-mode forward -> tuple (c1, c2, h1, h2, edge_feature)
    c1, c2, h1, h2, edge_feature = congib_forward(
        data_x, data_edge_index, conj_edge_x, conj_edge_index,
        conj_edge_is_dummy, params, training=True)

    # eval-mode forward -> cat([c1, h1], dim=-1)
    z = congib_forward(
        data_x, data_edge_index, conj_edge_x, conj_edge_index,
        conj_edge_is_dummy, params, training=False)

    for t in (c1, c2, h1, h2, edge_feature, z):
        jax.block_until_ready(t)

    assert c1.shape == (N, H) and h1.shape == (N, H)
    assert c2.shape == (N, H) and h2.shape == (N, H)
    assert edge_feature.shape == (N, F)
    assert z.shape == (N, 2 * H)

    # TODO(synk): encoder_f / club and the ConvTranspose1d edge_decoder only appear in the
    # loss functions (not in forward) and are intentionally not implemented here.
    print("KERNEL_OK")
</pallas_src>

<mosaic_0001>
module attributes {stable_mosaic.version = 11 : i64} {
  func.func @fused_gcn_kernel(%arg0: i32, %arg1: i32, %arg2: memref<16x128xbf16, #tpu.memory_space<vmem>>, %arg3: memref<16x1xf32, #tpu.memory_space<vmem>>, %arg4: memref<1x128xf32, #tpu.memory_space<vmem>>, %arg5: memref<128x128xbf16, #tpu.memory_space<vmem>>, %arg6: memref<1x128xf32, #tpu.memory_space<vmem>>, %arg7: memref<16x128xbf16, #tpu.memory_space<vmem>>, %arg8: memref<16x128xf32, #tpu.memory_space<vmem>>) attributes {dimension_semantics = [#tpu.dimension_semantics<parallel>, #tpu.dimension_semantics<arbitrary>], iteration_bounds = array<i64: 1, 1>, scalar_prefetch = 0 : i64, scratch_operands = 1 : i64, tpu.core_type = #tpu.core_type<tc>, window_params = [{transform_indices = @transform_0, window_bounds = array<i64: 16, 128>}, {transform_indices = @transform_1, window_bounds = array<i64: 16, 1>}, {transform_indices = @transform_2, window_bounds = array<i64: 1, 128>}, {transform_indices = @transform_3, window_bounds = array<i64: 128, 128>}, {pipeline_mode = #tpu.pipeline_mode<synchronous>, transform_indices = @transform_4, window_bounds = array<i64: 1, 128>}, {transform_indices = @transform_5, window_bounds = array<i64: 16, 128>}]} {
    %c0_i32 = arith.constant 0 : i32
    %0 = arith.cmpi eq, %arg1, %c0_i32 : i32
    %1 = arith.extui %0 : i1 to i32
    %c0_i32_0 = arith.constant 0 : i32
    %2 = arith.cmpi ne, %1, %c0_i32_0 : i32
    scf.if %2 {
      %cst_14 = arith.constant 0.000000e+00 : f32
      %20 = vector.broadcast %cst_14 : f32 to vector<16x128xf32>
      %c0_15 = arith.constant 0 : index
      %c0_16 = arith.constant 0 : index
      %21 = vector.load %arg8[%c0_15, %c0_16] : memref<16x128xf32, #tpu.memory_space<vmem>>, vector<16x128xf32>
      tpu.vector_store %arg8[%c0_15, %c0_16], %20 {strides = array<i32>} : memref<16x128xf32, #tpu.memory_space<vmem>>, vector<16x128xf32>,
    } else {
    }
    %c0 = arith.constant 0 : index
    %c0_1 = arith.constant 0 : index
    %3 = vector.load %arg2[%c0, %c0_1] : memref<16x128xbf16, #tpu.memory_space<vmem>>, vector<16x128xbf16>
    %4 = arith.extf %3 : vector<16x128xbf16> to vector<16x128xf32>
    %c0_2 = arith.constant 0 : index
    %c0_3 = arith.constant 0 : index
    %5 = vector.load %arg3[%c0_2, %c0_3] : memref<16x1xf32, #tpu.memory_space<vmem>>, vector<16x1xf32>
    %6 = vector.broadcast %5 : vector<16x1xf32> to vector<16x128xf32>
    %7 = arith.mulf %4, %6 : vector<16x128xf32>
    %c0_4 = arith.constant 0 : index
    %c0_5 = arith.constant 0 : index
    %8 = vector.load %arg4[%c0_4, %c0_5] : memref<1x128xf32, #tpu.memory_space<vmem>>, vector<1x128xf32>
    %9 = vector.broadcast %8 : vector<1x128xf32> to vector<16x128xf32>
    %10 = arith.mulf %7, %9 : vector<16x128xf32>
    %c0_6 = arith.constant 0 : index
    %c0_7 = arith.constant 0 : index
    %11 = vector.load %arg8[%c0_6, %c0_7] : memref<16x128xf32, #tpu.memory_space<vmem>>, vector<16x128xf32>
    %12 = arith.truncf %10 : vector<16x128xf32> to vector<16x128xbf16>
    %c0_8 = arith.constant 0 : index
    %c0_9 = arith.constant 0 : index
    %13 = vector.load %arg5[%c0_8, %c0_9] : memref<128x128xbf16, #tpu.memory_space<vmem>>, vector<128x128xbf16>
    %cst = arith.constant dense<0.000000e+00> : vector<16x128xf32>
    %14 = tpu.matmul %12, %13, %cst {dimension_numbers = #tpu.dot_dimension_numbers<[1], [0], [0], [1], [0, 0, 1, 1], [], []>} : vector<16x128xbf16>, vector<128x128xbf16>, vector<16x128xf32> -> vector<16x128xf32>
    %15 = arith.addf %11, %14 : vector<16x128xf32>
    %c0_10 = arith.constant 0 : index
    %c0_11 = arith.constant 0 : index
    %16 = vector.load %arg8[%c0_10, %c0_11] : memref<16x128xf32, #tpu.memory_space<vmem>>, vector<16x128xf32>
    tpu.vector_store %arg8[%c0_10, %c0_11], %15 {strides = array<i32>} : memref<16x128xf32, #tpu.memory_space<vmem>>, vector<16x128xf32>,
    %c0_i32_12 = arith.constant 0 : i32
    %17 = arith.cmpi eq, %arg1, %c0_i32_12 : i32
    %18 = arith.extui %17 : i1 to i32
    %c0_i32_13 = arith.constant 0 : i32
    %19 = arith.cmpi ne, %18, %c0_i32_13 : i32
    scf.if %19 {
      %c0_14 = arith.constant 0 : index
      %c0_15 = arith.constant 0 : index
      %20 = vector.load %arg8[%c0_14, %c0_15] : memref<16x128xf32, #tpu.memory_space<vmem>>, vector<16x128xf32>
      %c0_16 = arith.constant 0 : index
      %c0_17 = arith.constant 0 : index
      %21 = vector.load %arg6[%c0_16, %c0_17] : memref<1x128xf32, #tpu.memory_space<vmem>>, vector<1x128xf32>
      %22 = vector.broadcast %21 : vector<1x128xf32> to vector<16x128xf32>
      %23 = arith.addf %20, %22 : vector<16x128xf32>
      %cst_18 = arith.constant 0.000000e+00 : f32
      %24 = vector.broadcast %cst_18 : f32 to vector<16x128xf32>
      %25 = arith.maximumf %23, %24 : vector<16x128xf32>
      %26 = arith.truncf %25 : vector<16x128xf32> to vector<16x128xbf16>
      %c0_19 = arith.constant 0 : index
      %c0_20 = arith.constant 0 : index
      %27 = vector.load %arg7[%c0_19, %c0_20] : memref<16x128xbf16, #tpu.memory_space<vmem>>, vector<16x128xbf16>
      tpu.vector_store %arg7[%c0_19, %c0_20], %26 {strides = array<i32>} : memref<16x128xbf16, #tpu.memory_space<vmem>>, vector<16x128xbf16>,
    } else {
    }
    return
  }
  func.func @transform_0(%arg0: i32, %arg1: i32) -> (i32, i32) {
    %c0_i32 = arith.constant 0 : i32
    return %arg0, %arg1 : i32, i32
  }
  func.func @transform_1(%arg0: i32, %arg1: i32) -> (i32, i32) {
    %c0_i32 = arith.constant 0 : i32
    %c0_i32_0 = arith.constant 0 : i32
    return %arg0, %c0_i32 : i32, i32
  }
  func.func @transform_2(%arg0: i32, %arg1: i32) -> (i32, i32) {
    %c0_i32 = arith.constant 0 : i32
    %c0_i32_0 = arith.constant 0 : i32
    return %c0_i32, %arg1 : i32, i32
  }
  func.func @transform_3(%arg0: i32, %arg1: i32) -> (i32, i32) {
    %c0_i32 = arith.constant 0 : i32
    %c0_i32_0 = arith.constant 0 : i32
    return %arg1, %c0_i32 : i32, i32
  }
  func.func @transform_4(%arg0: i32, %arg1: i32) -> (i32, i32) {
    %c0_i32 = arith.constant 0 : i32
    %c0_i32_0 = arith.constant 0 : i32
    %c0_i32_1 = arith.constant 0 : i32
    return %c0_i32, %c0_i32_0 : i32, i32
  }
  func.func @transform_5(%arg0: i32, %arg1: i32) -> (i32, i32) {
    %c0_i32 = arith.constant 0 : i32
    %c0_i32_0 = arith.constant 0 : i32
    return %arg0, %c0_i32 : i32, i32
  }
}

</mosaic_0001>

<llo_original>
// kernel: tpu_custom_call.1
$region0: #{tpu_custom_call.1}
  #allocation0 [shape = 'u32[]', space=smem, size = 0x4, offset = 0x4, fixed_abs, tag = 'smem constant byte address 0x4 - core index']
  #allocation1 [shape = 'u32[144,128]{1,0:T(1,128)}', space=vmem, size = 0x12000, scoped, tag = 'internal scratch']
  #allocation2 [shape = 'f32[16,128]{1,0:T(8,128)}', space=vmem, size = 0x2000, scoped, tag = 'scratch operand']
  %s0 = inlined_call_operand.vmem [shape: bf16[16,128], index: 0, kind: input, shape index: {}]
  %s1 = inlined_call_operand.vmem [shape: f32[16,1], index: 1, kind: input, shape index: {}]
  %s2 = inlined_call_operand.vmem [shape: f32[1,128], index: 2, kind: input, shape index: {}]
  %s3 = inlined_call_operand.hbm [shape: bf16[128,128], index: 3, kind: input, shape index: {}]
  %s4 = inlined_call_operand.vmem [shape: f32[1,128], index: 4, kind: input, shape index: {}]
  %s5 = inlined_call_operand.hbm [shape: bf16[16,128], index: 5, kind: output, shape index: {}]
  %s6 = sld [smem:[#allocation0]]
  $region42: #{tpu_custom_call.1} parent=0
    _
  %s8 = ssub.s32 1, %s6
  %s9 = scalar_select 0, %s8, %s6
  $region1: #{tpu_custom_call.1} parent=0
    #allocation3 [shape = 'u8[32768]{0}', space=vmem, size = 0x8000, scoped, tag = 'input window, operand 3, single buffered']
    #allocation4 [shape = 's32[1]{0}', space=sflag, size = 0x4, scoped, tag = 'scoped memory for tpu_custom_call.1']
    #allocation5 [shape = 's32[1]{0}', space=sflag, size = 0x4, scoped, tag = 'scoped memory for tpu_custom_call.1']
    #allocation6 [shape = 'u8[4096]{0}', space=vmem, size = 0x1000, scoped, tag = 'output window, operand 0, single buffered']
    %10 = vsyncpa [#allocation4], 0
    %11 = vsyncpa [#allocation5], 0
    // Predicated region
    $region2: #{tpu_custom_call.1} parent=1 // pred_check
      _
    $region3: #{tpu_custom_call.1} parent=1 // pred_check_branch
      %13 = sbr.rel (0) target = $region5
    $region4: #{tpu_custom_call.1} parent=1 // pred_region
      _
    $region5: #{tpu_custom_call.1} parent=1 // pred_fallthru
      _
    // Predicated region
    $region6: #{tpu_custom_call.1} parent=1 // pred_check
      _
    $region7: #{tpu_custom_call.1} parent=1 // pred_check_branch
      %15 = sbr.rel (0) target = $region9
    $region8: #{tpu_custom_call.1} parent=1 // pred_region
      _
    $region9: #{tpu_custom_call.1} parent=1 // pred_fallthru
      _
    // Predicated region
    $region10: #{tpu_custom_call.1} parent=1 // pred_check
      _
    $region11: #{tpu_custom_call.1} parent=1 // pred_check_branch
      %17 = sbr.rel (0) target = $region13
    $region12: #{tpu_custom_call.1} parent=1 // pred_region
      _
    $region13: #{tpu_custom_call.1} parent=1 // pred_fallthru
      _
    // Predicated region
    $region14: #{tpu_custom_call.1} parent=1 // pred_check
      _
    $region15: #{tpu_custom_call.1} parent=1 // pred_check_branch
      %19 = sbr.rel (0) target = $region17
    $region16: #{tpu_custom_call.1} parent=1 // pred_region
      %s21 = ssub.s32 1024, 1024
      %22 = vsyncadd [#allocation4], %s21
      %s23 = sshll.u32 [#allocation3], 4
      %s24 = int_to_ptr.vmem [resolvable:$true] %s23
      %29 = dma.hbm_to_vmem [thread:$0]  %s3, 1024, %s24, [#allocation4], 64, 64, 4
    $region17: #{tpu_custom_call.1} parent=1 // pred_fallthru
      _
    // Predicated region
    $region18: #{tpu_custom_call.1} parent=1 // pred_check
      _
    $region19: #{tpu_custom_call.1} parent=1 // pred_check_branch
      %31 = sbr.rel (0) target = $region21
    $region20: #{tpu_custom_call.1} parent=1 // pred_region
      _
    $region21: #{tpu_custom_call.1} parent=1 // pred_fallthru
      _
    // Predicated region
    $region22: #{tpu_custom_call.1} parent=1 // pred_check
      _
    $region23: #{tpu_custom_call.1} parent=1 // pred_check_branch
      %33 = sbr.rel (0) target = $region25
    $region24: #{tpu_custom_call.1} parent=1 // pred_region
      %34 = dma.done [#allocation4], 1024
    $region25: #{tpu_custom_call.1} parent=1 // pred_fallthru
      _
    %p36 = scmp.eq.s32.totalorder 0, 0
    // Predicated region
    $region26: #{tpu_custom_call.1} parent=1 // pred_check
      %p37 = pneg %p36
    $region27: #{tpu_custom_call.1} parent=1 // pred_check_branch
      %39 = sbr.rel (%p37) target = $region29
    $region28: #{tpu_custom_call.1} parent=1 // pred_region
      %40 = vst [vmem:[#allocation2] sm:$0xff] 0.0
      %41 = vst [vmem:[#allocation2 + $0x8] sm:$0xff] 0.0
    $region29: #{tpu_custom_call.1} parent=1 // pred_fallthru
      _
    %v42 = vld [vmem:[%s0] sm:$0xf]
    %v43 = vld [vmem:[%s0 + $0x4] sm:$0xf]
    %v44 = vunpack.c.l.bf16 %v42
    %v45 = vunpack.c.l.bf16 %v43
    %v46 = vld [vmem:[%s1] sm:$0xff]
    %v47 = vld [vmem:[%s1 + $0x8] sm:$0xff]
    %49 = vset.pattern.permute.xlu0 0
    %50 = vperm.xlu0 %49, %v46
    %v51 = vpop.permute.xlu0 %50
    %54 = vset.pattern.permute.xlu0 0
    %55 = vperm.xlu0 %54, %v47
    %v56 = vpop.permute.xlu0 %55
    %v58 = vmul.f32 %v44, %v51
    %v59 = vmul.f32 %v45, %v56
    %v60 = vld [vmem:[%s2] sm:$0x1]
    %v62 = vlaneseq
    %v63 = vshrl.u32 %v62, 7
    %v64 = vsub.s32 0, %v63
    %v65 = vrot.slane %v60, %v64
    %v67 = vmul.f32 %v58, %v65
    %v68 = vmul.f32 %v59, %v65
    %v69 = vld [vmem:[#allocation2] sm:$0xff]
    %v70 = vld [vmem:[#allocation2 + $0x8] sm:$0xff]
    %v71 = vpack.c.bf16 %v68, %v67
    %v72 = vld [vmem:[#allocation3] sm:$0xf]
    %v73 = vld [vmem:[#allocation3 + $0x4] sm:$0xf]
    %v74 = vld [vmem:[#allocation3 + $0x8] sm:$0xf]
    %v75 = vld [vmem:[#allocation3 + $0xc] sm:$0xf]
    %v76 = vld [vmem:[#allocation3 + $0x10] sm:$0xf]
    %v77 = vld [vmem:[#allocation3 + $0x14] sm:$0xf]
    %v78 = vld [vmem:[#allocation3 + $0x18] sm:$0xf]
    %v79 = vld [vmem:[#allocation3 + $0x1c] sm:$0xf]
    %v80 = vld [vmem:[#allocation3 + $0x20] sm:$0xf]
    %v81 = vld [vmem:[#allocation3 + $0x24] sm:$0xf]
    %v82 = vld [vmem:[#allocation3 + $0x28] sm:$0xf]
    %v83 = vld [vmem:[#allocation3 + $0x2c] sm:$0xf]
    %v84 = vld [vmem:[#allocation3 + $0x30] sm:$0xf]
    %v85 = vld [vmem:[#allocation3 + $0x34] sm:$0xf]
    %v86 = vld [vmem:[#allocation3 + $0x38] sm:$0xf]
    %v87 = vld [vmem:[#allocation3 + $0x3c] sm:$0xf]
    %v104 = vunpack.c.l.b16 %v72
    %v105 = vunpack.c.l.b16 %v73
    %v106 = vunpack.c.l.b16 %v74
    %v107 = vunpack.c.l.b16 %v75
    %v108 = vunpack.c.l.b16 %v76
    %v109 = vunpack.c.l.b16 %v77
    %v110 = vunpack.c.l.b16 %v78
    %v111 = vunpack.c.l.b16 %v79
    %v112 = vunpack.c.l.b16 %v80
    %v113 = vunpack.c.l.b16 %v81
    %v114 = vunpack.c.l.b16 %v82
    %v115 = vunpack.c.l.b16 %v83
    %v116 = vunpack.c.l.b16 %v84
    %v117 = vunpack.c.l.b16 %v85
    %v118 = vunpack.c.l.b16 %v86
    %v119 = vunpack.c.l.b16 %v87
    %v120 = vpack.c.b16 %v105, %v104
    %v121 = vpack.c.b16 %v107, %v106
    %v122 = vpack.c.b16 %v109, %v108
    %v123 = vpack.c.b16 %v111, %v110
    %v124 = vpack.c.b16 %v113, %v112
    %v125 = vpack.c.b16 %v115, %v114
    %v126 = vpack.c.b16 %v117, %v116
    %v127 = vpack.c.b16 %v119, %v118
    %136 = vmatprep.subr.bf16.mxu0 0
    %137 = vmatpush1.bf16.msra.mxu0 %v120
    %138 = vmatprep.subr.bf16.mxu0 0
    %139 = vmatpush1.bf16.msra.mxu0 %v121
    %140 = vmatprep.subr.bf16.mxu0 0
    %141 = vmatpush1.bf16.msra.mxu0 %v122
    %142 = vmatprep.subr.bf16.mxu0 0
    %143 = vmatpush1.bf16.msra.mxu0 %v123
    %144 = vmatprep.subr.bf16.mxu0 0
    %145 = vmatpush1.bf16.msra.mxu0 %v124
    %146 = vmatprep.subr.bf16.mxu0 0
    %147 = vmatpush1.bf16.msra.mxu0 %v125
    %148 = vmatprep.subr.bf16.mxu0 0
    %149 = vmatpush1.bf16.msra.mxu0 %v126
    %150 = vmatprep.subr.bf16.mxu0 0
    %151 = vmatpush1.bf16.msra.mxu0 %v127
    %152 = vmatprep.subr.bf16.mxu0 0
    %153 = vmatpush1.bf16.msra.mxu0 0
    %154 = vmatprep.subr.bf16.mxu0 0
    %155 = vmatpush1.bf16.msra.mxu0 0
    %156 = vmatprep.subr.bf16.mxu0 0
    %157 = vmatpush1.bf16.msra.mxu0 0
    %158 = vmatprep.subr.bf16.mxu0 0
    %159 = vmatpush1.bf16.msra.mxu0 0
    %160 = vmatprep.subr.bf16.mxu0 0
    %161 = vmatpush1.bf16.msra.mxu0 0
    %162 = vmatprep.subr.bf16.mxu0 0
    %163 = vmatpush1.bf16.msra.mxu0 0
    %164 = vmatprep.subr.bf16.mxu0 0
    %165 = vmatpush1.bf16.msra.mxu0 0
    %166 = vmatprep.subr.bf16.mxu0 0
    %167 = vmatpush1.bf16.msra.mxu0 0
    %168 = vmatprep.mubr.bf16.mxu0 0
    %169 = vmatmul.mubr.bf16.gmra.mrb[0].mxu0 %v71
    %v170 = vpop.f32.mrb[0].mxu0
    %v171 = vadd.f32 0.0, %v170
    %v172 = vpop.f32.mrb[0].mxu0
    %v173 = vpop.f32.mrb[0].mxu0
    %v174 = vadd.f32 0.0, %v173
    %v175 = vpop.f32.mrb[0].mxu0
    %176 = vdwg.mxu0
    %v177 = vadd.f32 %v69, %v171
    %v178 = vadd.f32 %v70, %v174
    %179 = vst [vmem:[#allocation2] sm:$0xff] %v177
    %180 = vst [vmem:[#allocation2 + $0x8] sm:$0xff] %v178
    // Predicated region
    $region30: #{tpu_custom_call.1} parent=1 // pred_check
      %p181 = pneg %p36
    $region31: #{tpu_custom_call.1} parent=1 // pred_check_branch
      %183 = sbr.rel (%p181) target = $region33
    $region32: #{tpu_custom_call.1} parent=1 // pred_region
      %v184 = vld [vmem:[#allocation2] sm:$0xff]
      %v185 = vld [vmem:[#allocation2 + $0x8] sm:$0xff]
      %v186 = vld [vmem:[%s4] sm:$0x1]
      %v188 = vlaneseq
      %v189 = vshrl.u32 %v188, 7
      %v190 = vsub.s32 0, %v189
      %v191 = vrot.slane %v186, %v190
      %v193 = vadd.f32 %v184, %v191
      %v194 = vadd.f32 %v185, %v191
      %v195 = vmax.f32 %v193, 0.0
      %v196 = vmax.f32 %v194, 0.0
      %v197 = vpack.c.bf16 %v196, %v195
      %v199 = vunpack.c.l.b16 %v197
      %v200 = vunpack.c.h.b16 %v197
      %v201 = vpack.c.b16 %v199, %v199
      %v202 = vpack.c.b16 %v200, %v200
      %205 = vst [vmem:[#allocation6] sm:$0xf] %v201
      %206 = vst [vmem:[#allocation6 + $0x4] sm:$0xf] %v202
    $region33: #{tpu_custom_call.1} parent=1 // pred_fallthru
      _
    // Predicated region
    $region34: #{tpu_custom_call.1} parent=1 // pred_check
      _
    $region35: #{tpu_custom_call.1} parent=1 // pred_check_branch
      %208 = sbr.rel (0) target = $region37
    $region36: #{tpu_custom_call.1} parent=1 // pred_region
      %s210 = ssub.s32 128, 128
      %211 = vsyncadd [#allocation5], %s210
      %s212 = sshll.u32 [#allocation6], 4
      %s213 = int_to_ptr.vmem [resolvable:$true] %s212
      %218 = dma.vmem_to_hbm [thread:$0]  %s213, 128, %s5, [#allocation5], 64, 64, 4
    $region37: #{tpu_custom_call.1} parent=1 // pred_fallthru
      _
    // Predicated region
    $region38: #{tpu_custom_call.1} parent=1 // pred_check
      _
    $region39: #{tpu_custom_call.1} parent=1 // pred_check_branch
      %220 = sbr.rel (0) target = $region41
    $region40: #{tpu_custom_call.1} parent=1 // pred_region
      %221 = dma.done [#allocation5], 128
    $region41: #{tpu_custom_call.1} parent=1 // pred_fallthru
      _
    %222 = vsyncpa [#allocation4], 1
    %223 = vsyncpa [#allocation5], 1

</llo_original>
